<compile_context>
chip_gen: v7x
topology: tpu7x:2x2x1
jax: 0.10.0
libtpu: 0.0.40
codegen_flags: <defaults>
</compile_context>

<pallas_src>
import functools

import jax
import jax.numpy as jnp
from jax.experimental import pallas as pl
from jax.experimental.pallas import tpu as pltpu


_PAD_DIST = 1e30            # 0.5*||code||^2 sentinel for padded codebook rows
_MARGIN_COEF = 2.5 / 128.0  # sound bound on |f32 - bf16| dot error: ~2.5*2^-7*||x||*||c||


def _round_up(a, m):
    return (a + m - 1) // m * m


def _physical_vmem_bytes():
    try:
        return int(pltpu.get_tpu_info().vmem_capacity_bytes)
    except Exception:
        return 64 * 2 ** 20   # conservative fallback (v7x per-core VMEM)


# --------------------------------------------------------------------------- #
# One-shot kernel (C-tiled): implicit codebook + 0.5 * per-code squared norms.
# --------------------------------------------------------------------------- #
def _codebook_kernel(frozen_ref, w_ref, icb_ref, c2_ref):
    frozen = frozen_ref[...].astype(jnp.float32)    # (TC, Df)
    w = w_ref[...].astype(jnp.float32)              # (D, Df)  nn.Linear weight (out, in)
    # implicit_codebook = frozen @ W^T, expressed as a last-dim contraction (f32,
    # one-shot -> exactness matters more than speed here).
    icb = jax.lax.dot_general(frozen, w, (((1,), (1,)), ((), ())),
                              preferred_element_type=jnp.float32)        # (TC, D)
    icb_ref[...] = icb
    # 0.5*||code||^2 produced directly lane-dense as (1, TC) via a tiny matmul
    # (avoids a (TC,1)->(1,TC) relayout); the 0.5 is folded here once.
    ones = jnp.ones((1, icb.shape[1]), jnp.float32)
    c2 = jax.lax.dot_general(ones, icb * icb, (((1,), (1,)), ((), ())),
                             preferred_element_type=jnp.float32)         # (1, TC)
    c2_ref[...] = 0.5 * c2


# --------------------------------------------------------------------------- #
# Main tiled kernel: nearest-code search + gather + loss partial + rotation.
# --------------------------------------------------------------------------- #
def _simvq_tile_kernel(x_ref, icb_ref, c2_ref, q_ref, idx_ref, loss_ref, *, n_valid):
    x = x_ref[...].astype(jnp.float32)   # (TN, D)
    icb = icb_ref[...]                   # (C, D) f32, resident
    c2h = c2_ref[...]                    # (1, C) f32: 0.5*||c||^2 (padded rows = 1e30)
    tn, d = x.shape
    c = icb.shape[0]
    big_i = jnp.int32(2 ** 30)

    # bf16 "hi" copy of the codebook + its bf16 residual ("lo"): used for the
    # bf16 distance matmul and the exact-to-~1e-5 two-pass gather.  The VPU cast
    # cost is C*D per tile, negligible vs the TN*C*D MXU work.
    icb_bf = icb.astype(jnp.bfloat16)
    icb_res = (icb - icb_bf.astype(jnp.float32)).astype(jnp.bfloat16)

    # row norm^2 (reused by the argmin-margin check and the rotation trick)
    x2 = jnp.sum(x * x, axis=-1, keepdims=True)                          # (TN, 1)
    nx = jnp.sqrt(x2)

    # --- nearest code: bf16 operands, f32 accumulation ------------------------
    xc = jax.lax.dot_general(x.astype(jnp.bfloat16), icb_bf,
                             (((1,), (1,)), ((), ())),
                             preferred_element_type=jnp.float32)         # (TN, C)
    d2 = c2h - xc                        # 0.5||c||^2 - x.c   (x^2 term dropped)
    col = jax.lax.broadcasted_iota(jnp.int32, (tn, c), 1)                # (TN, C)
    min1 = jnp.min(d2, axis=-1, keepdims=True)                           # (TN, 1)
    # first occurrence on ties (matches torch.argmin)
    idx = jnp.min(jnp.where(d2 <= min1, col, big_i), axis=-1, keepdims=True)
    idx_ref[...] = idx

    # --- guaranteed-exact fallback --------------------------------------------
    # If any row's bf16 top-2 gap is within a sound bound on the bf16 rounding
    # error, redo this tile's distances in f32 and overwrite the indices.
    min2 = jnp.min(jnp.where(col == idx, jnp.float32(_PAD_DIST), d2),
                   axis=-1, keepdims=True)                               # (TN, 1)
    max_c2 = jnp.max(jnp.where(c2h < jnp.float32(_PAD_DIST * 0.5), c2h,
                               jnp.float32(0.0)),
                     axis=-1, keepdims=True)                             # (1, 1)
    cmax = jnp.sqrt(2.0 * max_c2)
    margin = jnp.float32(_MARGIN_COEF) * nx * cmax                       # (TN, 1)
    close = ((min2 - min1) <= margin).astype(jnp.float32)
    n_close = jnp.sum(close, axis=0, keepdims=True)                      # (1, 1)

    @pl.when(n_close[0, 0] > 0.5)
    def _():
        xc_f = jax.lax.dot_general(x, icb, (((1,), (1,)), ((), ())),
                                   preferred_element_type=jnp.float32)   # (TN, C)
        d2_f = c2h - xc_f
        m_f = jnp.min(d2_f, axis=-1, keepdims=True)
        idx_ref[...] = jnp.min(jnp.where(d2_f <= m_f, col, big_i),
                               axis=-1, keepdims=True)

    idx_final = idx_ref[...]                                             # (TN, 1)

    # --- gather quantized codes: two bf16 one-hot matmuls (hi + residual) -----
    onehot = (col == idx_final).astype(jnp.bfloat16)                     # (TN, C)
    quant = (jax.lax.dot_general(onehot, icb_bf, (((1,), (0,)), ((), ())),
                                 preferred_element_type=jnp.float32)
             + jax.lax.dot_general(onehot, icb_res, (((1,), (0,)), ((), ())),
                                   preferred_element_type=jnp.float32))  # (TN, D)
    # TODO(synk): for very large C tile over C with a running (min, idx) and a
    # winners-only / per-row VMEM gather instead of the full one-hot matmuls.

    # --- per-tile commitment-loss partial (mask padded rows), lane-dense ------
    rows = jax.lax.broadcasted_iota(jnp.int32, (tn, 1), 0)
    valid = ((pl.program_id(0) * tn + rows) < n_valid).astype(jnp.float32)
    diff = (x - quant) * valid
    partial = jnp.sum(jnp.sum(diff * diff, axis=0, keepdims=True),
                      axis=1, keepdims=True)                             # (1, 1)
    loss_ref[...] = jnp.broadcast_to(partial, loss_ref.shape)            # (1, 128)

    # --- rotation trick, fused: only three lane reductions (x^2, q^2, x.q) ----
    eps = jnp.float32(1e-6)
    q2 = jnp.sum(quant * quant, axis=-1, keepdims=True)                  # (TN, 1)
    xq = jnp.sum(x * quant, axis=-1, keepdims=True)                      # (TN, 1)
    nq = jnp.sqrt(q2)
    inv_nx = pl.reciprocal(jnp.maximum(nx, eps), approx=True)
    inv_nq = pl.reciprocal(jnp.maximum(nq, eps), approx=True)
    # ||u + qh||^2 with u = x*inv_nx, qh = q*inv_nq (never materialized)
    wn2 = x2 * inv_nx * inv_nx + q2 * inv_nq * inv_nq + 2.0 * xq * inv_nx * inv_nq
    wn2 = jnp.maximum(wn2, jnp.float32(0.0))
    inv_wn = pl.reciprocal(jnp.maximum(jnp.sqrt(wn2), jnp.float32(1e-12)),
                           approx=True)
    a = 2.0 * (x2 * inv_nx + xq * inv_nq) * inv_wn * inv_wn              # (TN, 1)
    scale = nq * inv_nx
    coef_x = (1.0 - a * inv_nx) * scale
    coef_q = (2.0 * x2 * inv_nx - a) * inv_nq * scale
    q_ref[...] = (x * coef_x + quant * coef_q).astype(q_ref.dtype)


# --------------------------------------------------------------------------- #
# Wrapper
# --------------------------------------------------------------------------- #
def simvq_forward(x, frozen_codebook, linear_weight,
                  commitment_weight=1.0,
                  input_to_quantize_commit_loss_weight=0.25,
                  tile_n=512):
    """x: (b, n, dim); frozen_codebook: (C, Df); linear_weight: (dim, Df)."""
    b, n, d = x.shape
    N = b * n
    C, Df = frozen_codebook.shape
    assert linear_weight.shape == (d, Df)

    vmem_cap = (_physical_vmem_bytes() * 3) // 4

    # ---- one-shot implicit codebook (C-tiled; pads C up to a lane-dense size) -
    tc = _round_up(C, 128) if C <= 2048 else 1024
    C_pad = _round_up(C, tc)
    fc = frozen_codebook.astype(jnp.float32)
    if C_pad != C:
        fc = jnp.pad(fc, ((0, C_pad - C), (0, 0)))
    w = linear_weight.astype(jnp.float32)

    cb_est = 4 * (2 * tc * Df + 2 * d * Df + 4 * tc * d + 2 * tc)
    cb_vmem = int(min(max(2 * cb_est, 16 * 2 ** 20), vmem_cap))
    icb, c2h = pl.pallas_call(
        _codebook_kernel,
        grid=(C_pad // tc,),
        in_specs=[pl.BlockSpec((tc, Df), lambda i: (i, 0)),
                  pl.BlockSpec((d, Df), lambda i: (0, 0))],
        out_specs=(pl.BlockSpec((tc, d), lambda i: (i, 0)),
                   pl.BlockSpec((1, tc), lambda i: (0, i))),
        out_shape=(jax.ShapeDtypeStruct((C_pad, d), jnp.float32),
                   jax.ShapeDtypeStruct((1, C_pad), jnp.float32)),
        compiler_params=pltpu.CompilerParams(
            dimension_semantics=("parallel",),
            vmem_limit_bytes=cb_vmem),
    )(fc, w)
    if C_pad != C:
        lane = jax.lax.broadcasted_iota(jnp.int32, (1, C_pad), 1)
        c2h = jnp.where(lane < C, c2h, jnp.float32(_PAD_DIST))  # mask padded codes

    # ---- choose the N tile ---------------------------------------------------
    def est_bytes(tn):
        return (4 * (2 * (C_pad * d + C_pad)      # resident icb + c2 (double-buffered)
                     + 2 * 2 * tn * d             # x / q tiles (double-buffered)
                     + 6 * tn * C_pad             # live (TN,C) intermediates
                     + 6 * tn * d                 # quant / diff / coef temporaries
                     + 2 * tn + 2 * 128)          # idx / loss blocks
                + 2 * C_pad * d * 2)              # in-kernel bf16 icb + residual

    min_tn = max(8, min(256, tile_n))   # keep MXU M-dim filled on v6e/v7x (128 on v5e)
    if N <= tile_n:
        tn = max(_round_up(N, 8), 8)
    else:
        tn = tile_n
        while tn > min_tn and est_bytes(tn) > vmem_cap:
            tn //= 2
        tn = max(tn, min_tn)
        # TODO(synk): if est_bytes(min_tn) still exceeds the cap (huge C*D), tile
        # over C with a running (min, argmin) instead of shrinking TN further.
    n_pad = _round_up(N, tn)
    num_tiles = n_pad // tn
    if num_tiles > 1 and num_tiles % 2 == 1:
        # prefer an even tile count so both v7x TensorCores get equal work
        cand = _round_up(-(-N // (num_tiles + 1)), 8)
        if cand >= min_tn:
            tn = cand
            n_pad = _round_up(N, tn)
            num_tiles = n_pad // tn

    x2d = x.reshape(N, d)
    if n_pad != N:
        x2d = jnp.pad(x2d, ((0, n_pad - N), (0, 0)))

    vmem_limit = int(min(max(int(est_bytes(tn) * 1.25), 16 * 2 ** 20), vmem_cap))

    kernel = functools.partial(_simvq_tile_kernel, n_valid=N)
    q2d, idx_col, loss_parts = pl.pallas_call(
        kernel,
        grid=(num_tiles,),
        in_specs=[pl.BlockSpec((tn, d), lambda i: (i, 0)),
                  pl.BlockSpec((C_pad, d), lambda i: (0, 0)),
                  pl.BlockSpec((1, C_pad), lambda i: (0, 0))],
        out_specs=(pl.BlockSpec((tn, d), lambda i: (i, 0)),
                   pl.BlockSpec((tn, 1), lambda i: (i, 0)),
                   pl.BlockSpec((1, 128), lambda i: (0, i))),
        out_shape=(jax.ShapeDtypeStruct((n_pad, d), x.dtype),
                   jax.ShapeDtypeStruct((n_pad, 1), jnp.int32),
                   jax.ShapeDtypeStruct((1, num_tiles * 128), jnp.float32)),
        compiler_params=pltpu.CompilerParams(
            dimension_semantics=("parallel",),
            vmem_limit_bytes=vmem_limit),
    )(x2d, icb, c2h)

    quantized = q2d[:N].reshape(b, n, d)
    indices = idx_col[:N, 0].reshape(b, n)   # int32 (torch returns int64)
    sq_sum = jnp.sum(loss_parts.reshape(num_tiles, 128)[:, 0])
    commit_loss = (sq_sum / jnp.float32(N * d)) * jnp.float32(
        (1.0 + input_to_quantize_commit_loss_weight) * commitment_weight)
    return quantized, indices, commit_loss


# --------------------------------------------------------------------------- #
# Pure-JAX reference (forward-value semantics of SimVQ.forward)
# --------------------------------------------------------------------------- #
def simvq_reference(x, frozen_codebook, linear_weight,
                    commitment_weight=1.0,
                    input_to_quantize_commit_loss_weight=0.25):
    b, n, d = x.shape
    xf = x.reshape(b * n, d).astype(jnp.float32)
    icb = frozen_codebook.astype(jnp.float32) @ linear_weight.astype(jnp.float32).T
    d2 = (jnp.sum(xf * xf, -1, keepdims=True)
          - 2.0 * xf @ icb.T
          + jnp.sum(icb * icb, -1)[None, :])
    idx = jnp.argmin(d2, axis=-1)
    quant = icb[idx]
    mse = jnp.mean((xf - quant) ** 2)
    loss = mse * (1.0 + input_to_quantize_commit_loss_weight) * commitment_weight
    eps = 1e-6
    nx = jnp.linalg.norm(xf, axis=-1, keepdims=True)
    nq = jnp.linalg.norm(quant, axis=-1, keepdims=True)
    u = xf / jnp.maximum(nx, eps)
    qh = quant / jnp.maximum(nq, eps)
    w = u + qh
    w = w / jnp.maximum(jnp.linalg.norm(w, axis=-1, keepdims=True), 1e-12)
    rot = (xf - 2.0 * jnp.sum(xf * w, -1, keepdims=True) * w
           + 2.0 * jnp.sum(xf * u, -1, keepdims=True) * qh)
    q_out = rot * (nq / jnp.maximum(nx, eps))
    return q_out.reshape(b, n, d).astype(x.dtype), idx.reshape(b, n), loss


if __name__ == "__main__":
    key = jax.random.PRNGKey(0)
    b, n, dim = 2, 8, 32
    codebook_size = 256           # lane-dense codebook axis (multiple of 128)
    frozen_codebook_dim = dim     # default(frozen_codebook_dim, dim)

    k1, k2, k3 = jax.random.split(key, 3)
    # input x: (b, n, dim), channel-last (channel_first=False)
    x = jax.random.normal(k1, (b, n, dim), dtype=jnp.float32)
    # frozen_codebook = randn(C, Df) * Df**-0.5
    frozen_codebook = (jax.random.normal(k2, (codebook_size, frozen_codebook_dim),
                                         dtype=jnp.float32)
                       * frozen_codebook_dim ** -0.5)
    # nn.Linear(Df, dim, bias=False) default init: U(-1/sqrt(Df), 1/sqrt(Df)), shape (dim, Df)
    bound = 1.0 / (frozen_codebook_dim ** 0.5)
    linear_weight = jax.random.uniform(k3, (dim, frozen_codebook_dim),
                                       dtype=jnp.float32, minval=-bound, maxval=bound)

    quantized, indices, commit_loss = simvq_forward(x, frozen_codebook, linear_weight)
    jax.block_until_ready((quantized, indices, commit_loss))

    ref_q, ref_idx, ref_loss = simvq_reference(x, frozen_codebook, linear_weight)

    assert quantized.shape == (b, n, dim)
    assert indices.shape == (b, n)
    assert bool(jnp.all(jnp.isfinite(quantized)))
    assert bool(jnp.isfinite(commit_loss))
    assert bool(jnp.all((indices >= 0) & (indices < codebook_size)))
    assert bool(jnp.array_equal(indices, ref_idx.astype(indices.dtype)))
    assert bool(jnp.allclose(quantized, ref_q, atol=2e-2, rtol=2e-2))
    assert bool(jnp.allclose(commit_loss, ref_loss, rtol=1e-3, atol=1e-5))
    print("KERNEL_OK")
</pallas_src>

<mosaic_0001>
module attributes {stable_mosaic.version = 11 : i64} {
  func.func @_codebook_kernel(%arg0: i32, %arg1: memref<256x32xf32, #tpu.memory_space<vmem>>, %arg2: memref<32x32xf32, #tpu.memory_space<vmem>>, %arg3: memref<256x32xf32, #tpu.memory_space<vmem>>, %arg4: memref<1x256xf32, #tpu.memory_space<vmem>>) attributes {dimension_semantics = [#tpu.dimension_semantics<parallel>], iteration_bounds = array<i64: 1>, scalar_prefetch = 0 : i64, scratch_operands = 0 : i64, tpu.core_type = #tpu.core_type<tc>, window_params = [{transform_indices = @transform_0, window_bounds = array<i64: 256, 32>}, {pipeline_mode = #tpu.pipeline_mode<synchronous>, transform_indices = @transform_1, window_bounds = array<i64: 32, 32>}, {transform_indices = @transform_2, window_bounds = array<i64: 256, 32>}, {transform_indices = @transform_3, window_bounds = array<i64: 1, 256>}]} {
    %c0 = arith.constant 0 : index
    %c0_0 = arith.constant 0 : index
    %0 = vector.load %arg1[%c0, %c0_0] : memref<256x32xf32, #tpu.memory_space<vmem>>, vector<256x32xf32>
    %c0_1 = arith.constant 0 : index
    %c0_2 = arith.constant 0 : index
    %1 = vector.load %arg2[%c0_1, %c0_2] : memref<32x32xf32, #tpu.memory_space<vmem>>, vector<32x32xf32>
    %cst = arith.constant dense<0.000000e+00> : vector<256x32xf32>
    %2 = tpu.matmul %0, %1, %cst {dimension_numbers = #tpu.dot_dimension_numbers<[1], [1], [0], [0], [0, 0, 1, 0], [], []>} : vector<256x32xf32>, vector<32x32xf32>, vector<256x32xf32> -> vector<256x32xf32>
    %c0_3 = arith.constant 0 : index
    %c0_4 = arith.constant 0 : index
    %3 = vector.load %arg3[%c0_3, %c0_4] : memref<256x32xf32, #tpu.memory_space<vmem>>, vector<256x32xf32>
    tpu.vector_store %arg3[%c0_3, %c0_4], %2 {strides = array<i32>} : memref<256x32xf32, #tpu.memory_space<vmem>>, vector<256x32xf32>,
    %cst_5 = arith.constant 1.000000e+00 : f32
    %4 = vector.broadcast %cst_5 : f32 to vector<1x32xf32>
    %5 = arith.mulf %2, %2 : vector<256x32xf32>
    %cst_6 = arith.constant dense<0.000000e+00> : vector<1x256xf32>
    %6 = tpu.matmul %4, %5, %cst_6 {dimension_numbers = #tpu.dot_dimension_numbers<[1], [1], [0], [0], [0, 0, 1, 0], [], []>} : vector<1x32xf32>, vector<256x32xf32>, vector<1x256xf32> -> vector<1x256xf32>
    %cst_7 = arith.constant 5.000000e-01 : f32
    %7 = vector.broadcast %cst_7 : f32 to vector<1x256xf32>
    %8 = arith.mulf %7, %6 : vector<1x256xf32>
    %c0_8 = arith.constant 0 : index
    %c0_9 = arith.constant 0 : index
    %9 = vector.load %arg4[%c0_8, %c0_9] : memref<1x256xf32, #tpu.memory_space<vmem>>, vector<1x256xf32>
    tpu.vector_store %arg4[%c0_8, %c0_9], %8 {strides = array<i32>} : memref<1x256xf32, #tpu.memory_space<vmem>>, vector<1x256xf32>,
    return
  }
  func.func @transform_0(%arg0: i32) -> (i32, i32) {
    %c0_i32 = arith.constant 0 : i32
    %c0_i32_0 = arith.constant 0 : i32
    return %arg0, %c0_i32 : i32, i32
  }
  func.func @transform_1(%arg0: i32) -> (i32, i32) {
    %c0_i32 = arith.constant 0 : i32
    %c0_i32_0 = arith.constant 0 : i32
    %c0_i32_1 = arith.constant 0 : i32
    return %c0_i32, %c0_i32_0 : i32, i32
  }
  func.func @transform_2(%arg0: i32) -> (i32, i32) {
    %c0_i32 = arith.constant 0 : i32
    %c0_i32_0 = arith.constant 0 : i32
    return %arg0, %c0_i32 : i32, i32
  }
  func.func @transform_3(%arg0: i32) -> (i32, i32) {
    %c0_i32 = arith.constant 0 : i32
    %c0_i32_0 = arith.constant 0 : i32
    return %c0_i32, %arg0 : i32, i32
  }
}

</mosaic_0001>

<llo_original>
// kernel: tpu_custom_call.1
$region0: #{tpu_custom_call.1}
  #allocation0 [shape = 'u32[]', space=smem, size = 0x4, offset = 0x4, fixed_abs, tag = 'smem constant byte address 0x4 - core index']
  #allocation1 [shape = 'u32[144,128]{1,0:T(1,128)}', space=vmem, size = 0x12000, scoped, tag = 'internal scratch']
  %s0 = inlined_call_operand.vmem [shape: f32[256,32], index: 0, kind: input, shape index: {}]
  %s1 = inlined_call_operand.vmem [shape: f32[32,32], index: 1, kind: input, shape index: {}]
  %s2 = inlined_call_operand.vmem [shape: f32[256,32], index: 2, kind: output, shape index: {0}]
  %s3 = inlined_call_operand.hbm [shape: f32[1,256], index: 3, kind: output, shape index: {1}]
  %4 = xla_tuple %s2, %s3
  %s5 = sld [smem:[#allocation0]]
  $region26: #{tpu_custom_call.1} parent=0
    _
  %s7 = ssub.s32 1, %s5
  %s8 = scalar_select 0, %s7, %s5
  $region1: #{tpu_custom_call.1} parent=0
    #allocation2 [shape = 'u8[1024]{0}', space=vmem, size = 0x400, scoped, tag = 'output window, operand 1, single buffered']
    #allocation3 [shape = 's32[1]{0}', space=sflag, size = 0x4, scoped, tag = 'scoped memory for tpu_custom_call.1']
    %9 = vsyncpa [#allocation3], 0
    // Predicated region
    $region2: #{tpu_custom_call.1} parent=1 // pred_check
      _
    $region3: #{tpu_custom_call.1} parent=1 // pred_check_branch
      %11 = sbr.rel (0) target = $region5
    $region4: #{tpu_custom_call.1} parent=1 // pred_region
      _
    $region5: #{tpu_custom_call.1} parent=1 // pred_fallthru
      _
    // Predicated region
    $region6: #{tpu_custom_call.1} parent=1 // pred_check
      _
    $region7: #{tpu_custom_call.1} parent=1 // pred_check_branch
      %13 = sbr.rel (0) target = $region9
    $region8: #{tpu_custom_call.1} parent=1 // pred_region
      _
    $region9: #{tpu_custom_call.1} parent=1 // pred_fallthru
      _
    %v14 = vld [vmem:[%s0] sm:$0xff]
    %v15 = vld [vmem:[%s0 + $0x8] sm:$0xff]
    %v16 = vld [vmem:[%s0 + $0x10] sm:$0xff]
    %v17 = vld [vmem:[%s0 + $0x18] sm:$0xff]
    %v18 = vld [vmem:[%s0 + $0x20] sm:$0xff]
    %v19 = vld [vmem:[%s0 + $0x28] sm:$0xff]
    %v20 = vld [vmem:[%s0 + $0x30] sm:$0xff]
    %v21 = vld [vmem:[%s0 + $0x38] sm:$0xff]
    %v22 = vld [vmem:[%s0 + $0x40] sm:$0xff]
    %v23 = vld [vmem:[%s0 + $0x48] sm:$0xff]
    %v24 = vld [vmem:[%s0 + $0x50] sm:$0xff]
    %v25 = vld [vmem:[%s0 + $0x58] sm:$0xff]
    %v26 = vld [vmem:[%s0 + $0x60] sm:$0xff]
    %v27 = vld [vmem:[%s0 + $0x68] sm:$0xff]
    %v28 = vld [vmem:[%s0 + $0x70] sm:$0xff]
    %v29 = vld [vmem:[%s0 + $0x78] sm:$0xff]
    %v30 = vld [vmem:[%s0 + $0x80] sm:$0xff]
    %v31 = vld [vmem:[%s0 + $0x88] sm:$0xff]
    %v32 = vld [vmem:[%s0 + $0x90] sm:$0xff]
    %v33 = vld [vmem:[%s0 + $0x98] sm:$0xff]
    %v34 = vld [vmem:[%s0 + $0xa0] sm:$0xff]
    %v35 = vld [vmem:[%s0 + $0xa8] sm:$0xff]
    %v36 = vld [vmem:[%s0 + $0xb0] sm:$0xff]
    %v37 = vld [vmem:[%s0 + $0xb8] sm:$0xff]
    %v38 = vld [vmem:[%s0 + $0xc0] sm:$0xff]
    %v39 = vld [vmem:[%s0 + $0xc8] sm:$0xff]
    %v40 = vld [vmem:[%s0 + $0xd0] sm:$0xff]
    %v41 = vld [vmem:[%s0 + $0xd8] sm:$0xff]
    %v42 = vld [vmem:[%s0 + $0xe0] sm:$0xff]
    %v43 = vld [vmem:[%s0 + $0xe8] sm:$0xff]
    %v44 = vld [vmem:[%s0 + $0xf0] sm:$0xff]
    %v45 = vld [vmem:[%s0 + $0xf8] sm:$0xff]
    %v46 = vld [vmem:[%s1] sm:$0xff]
    %v47 = vld [vmem:[%s1 + $0x8] sm:$0xff]
    %v48 = vld [vmem:[%s1 + $0x10] sm:$0xff]
    %v49 = vld [vmem:[%s1 + $0x18] sm:$0xff]
    %vm50 = vcmask 261120
    %v52 = vsel %vm50, %v14, 0
    %v55 = vsel %vm50, %v15, 0
    %v58 = vsel %vm50, %v16, 0
    %v61 = vsel %vm50, %v17, 0
    %v64 = vsel %vm50, %v18, 0
    %v67 = vsel %vm50, %v19, 0
    %v70 = vsel %vm50, %v20, 0
    %v73 = vsel %vm50, %v21, 0
    %v76 = vsel %vm50, %v22, 0
    %v79 = vsel %vm50, %v23, 0
    %v82 = vsel %vm50, %v24, 0
    %v85 = vsel %vm50, %v25, 0
    %v88 = vsel %vm50, %v26, 0
    %v91 = vsel %vm50, %v27, 0
    %v94 = vsel %vm50, %v28, 0
    %v97 = vsel %vm50, %v29, 0
    %v100 = vsel %vm50, %v30, 0
    %v103 = vsel %vm50, %v31, 0
    %v106 = vsel %vm50, %v32, 0
    %v109 = vsel %vm50, %v33, 0
    %v112 = vsel %vm50, %v34, 0
    %v115 = vsel %vm50, %v35, 0
    %v118 = vsel %vm50, %v36, 0
    %v121 = vsel %vm50, %v37, 0
    %v124 = vsel %vm50, %v38, 0
    %v127 = vsel %vm50, %v39, 0
    %v130 = vsel %vm50, %v40, 0
    %v133 = vsel %vm50, %v41, 0
    %v136 = vsel %vm50, %v42, 0
    %v139 = vsel %vm50, %v43, 0
    %v142 = vsel %vm50, %v44, 0
    %v145 = vsel %vm50, %v45, 0
    %v148 = vsel %vm50, %v46, 0
    %v151 = vsel %vm50, %v47, 0
    %v154 = vsel %vm50, %v48, 0
    %v157 = vsel %vm50, %v49, 0
    %159 = vmatprep.subr.mxu0 0.0
    %160 = vmatpush1.xpose.msra.mxu0 %v148
    %161 = vmatprep.subr.mxu0 0.0
    %162 = vmatpush1.xpose.msra.mxu0 %v151
    %163 = vmatprep.subr.mxu0 0.0
    %164 = vmatpush1.xpose.msra.mxu0 %v154
    %165 = vmatprep.subr.mxu0 0.0
    %166 = vmatpush1.xpose.msra.mxu0 %v157
    %167 = vmatprep.subr.mxu0 0.0
    %168 = vmatpush1.xpose.msra.mxu0 0.0
    %169 = vmatprep.subr.mxu0 0.0
    %170 = vmatpush1.xpose.msra.mxu0 0.0
    %171 = vmatprep.subr.mxu0 0.0
    %172 = vmatpush1.xpose.msra.mxu0 0.0
    %173 = vmatprep.subr.mxu0 0.0
    %174 = vmatpush1.xpose.msra.mxu0 0.0
    %175 = vmatprep.subr.mxu0 0.0
    %176 = vmatpush1.xpose.msra.mxu0 0.0
    %177 = vmatprep.subr.mxu0 0.0
    %178 = vmatpush1.xpose.msra.mxu0 0.0
    %179 = vmatprep.subr.mxu0 0.0
    %180 = vmatpush1.xpose.msra.mxu0 0.0
    %181 = vmatprep.subr.mxu0 0.0
    %182 = vmatpush1.xpose.msra.mxu0 0.0
    %183 = vmatprep.subr.mxu0 0.0
    %184 = vmatpush1.xpose.msra.mxu0 0.0
    %185 = vmatprep.subr.mxu0 0.0
    %186 = vmatpush1.xpose.msra.mxu0 0.0
    %187 = vmatprep.subr.mxu0 0.0
    %188 = vmatpush1.xpose.msra.mxu0 0.0
    %189 = vmatprep.subr.mxu0 0.0
    %190 = vmatpush1.xpose.msra.mxu0 0.0
    %191 = vmatprep.subr.mxu0 0.0
    %192 = vmatpush1.xpose.msra.mxu0 0.0
    %193 = vmatprep.subr.mxu0 0.0
    %194 = vmatpush1.xpose.msra.mxu0 0.0
    %195 = vmatprep.subr.mxu0 0.0
    %196 = vmatpush1.xpose.msra.mxu0 0.0
    %197 = vmatprep.subr.mxu0 0.0
    %198 = vmatpush1.xpose.msra.mxu0 0.0
    %199 = vmatprep.subr.mxu0 0.0
    %200 = vmatpush1.xpose.msra.mxu0 0.0
    %201 = vmatprep.subr.mxu0 0.0
    %202 = vmatpush1.xpose.msra.mxu0 0.0
    %203 = vmatprep.subr.mxu0 0.0
    %204 = vmatpush1.xpose.msra.mxu0 0.0
    %205 = vmatprep.subr.mxu0 0.0
    %206 = vmatpush1.xpose.msra.mxu0 0.0
    %207 = vmatprep.subr.mxu0 0.0
    %208 = vmatpush1.xpose.msra.mxu0 0.0
    %209 = vmatprep.subr.mxu0 0.0
    %210 = vmatpush1.xpose.msra.mxu0 0.0
    %211 = vmatprep.subr.mxu0 0.0
    %212 = vmatpush1.xpose.msra.mxu0 0.0
    %213 = vmatprep.subr.mxu0 0.0
    %214 = vmatpush1.xpose.msra.mxu0 0.0
    %215 = vmatprep.subr.mxu0 0.0
    %216 = vmatpush1.xpose.msra.mxu0 0.0
    %217 = vmatprep.subr.mxu0 0.0
    %218 = vmatpush1.xpose.msra.mxu0 0.0
    %219 = vmatprep.subr.mxu0 0.0
    %220 = vmatpush1.xpose.msra.mxu0 0.0
    %221 = vmatprep.subr.mxu0 0.0
    %222 = vmatpush1.xpose.msra.mxu0 0.0
    %223 = vmatprep.mubr.f32.mxu0 0.0
    %224 = vmatmul.mubr.f32.gmra.mrb[0].mxu0 %v52
    %v225 = vpop.f32.mrb[0].mxu0
    %v226 = vadd.f32 0.0, %v225
    %v227 = vpop.f32.mrb[0].mxu0
    %228 = vmatprep.mubr.f32.mxu0 0.0
    %229 = vmatmul.mubr.f32.gmra.mrb[0].mxu0 %v55
    %v230 = vpop.f32.mrb[0].mxu0
    %v231 = vadd.f32 0.0, %v230
    %v232 = vpop.f32.mrb[0].mxu0
    %233 = vmatprep.mubr.f32.mxu0 0.0
    %234 = vmatmul.mubr.f32.gmra.mrb[0].mxu0 %v58
    %v235 = vpop.f32.mrb[0].mxu0
    %v236 = vadd.f32 0.0, %v235
    %v237 = vpop.f32.mrb[0].mxu0
    %238 = vmatprep.mubr.f32.mxu0 0.0
    %239 = vmatmul.mubr.f32.gmra.mrb[0].mxu0 %v61
    %v240 = vpop.f32.mrb[0].mxu0
    %v241 = vadd.f32 0.0, %v240
    %v242 = vpop.f32.mrb[0].mxu0
    %243 = vmatprep.mubr.f32.mxu0 0.0
    %244 = vmatmul.mubr.f32.gmra.mrb[0].mxu0 %v64
    %v245 = vpop.f32.mrb[0].mxu0
    %v246 = vadd.f32 0.0, %v245
    %v247 = vpop.f32.mrb[0].mxu0
    %248 = vmatprep.mubr.f32.mxu0 0.0
    %249 = vmatmul.mubr.f32.gmra.mrb[0].mxu0 %v67
    %v250 = vpop.f32.mrb[0].mxu0
    %v251 = vadd.f32 0.0, %v250
    %v252 = vpop.f32.mrb[0].mxu0
    %253 = vmatprep.mubr.f32.mxu0 0.0
    %254 = vmatmul.mubr.f32.gmra.mrb[0].mxu0 %v70
    %v255 = vpop.f32.mrb[0].mxu0
    %v256 = vadd.f32 0.0, %v255
    %v257 = vpop.f32.mrb[0].mxu0
    %258 = vmatprep.mubr.f32.mxu0 0.0
    %259 = vmatmul.mubr.f32.gmra.mrb[0].mxu0 %v73
    %v260 = vpop.f32.mrb[0].mxu0
    %v261 = vadd.f32 0.0, %v260
    %v262 = vpop.f32.mrb[0].mxu0
    %263 = vmatprep.mubr.f32.mxu0 0.0
    %264 = vmatmul.mubr.f32.gmra.mrb[0].mxu0 %v76
    %v265 = vpop.f32.mrb[0].mxu0
    %v266 = vadd.f32 0.0, %v265
    %v267 = vpop.f32.mrb[0].mxu0
    %268 = vmatprep.mubr.f32.mxu0 0.0
    %269 = vmatmul.mubr.f32.gmra.mrb[0].mxu0 %v79
    %v270 = vpop.f32.mrb[0].mxu0
    %v271 = vadd.f32 0.0, %v270
    %v272 = vpop.f32.mrb[0].mxu0
    %273 = vmatprep.mubr.f32.mxu0 0.0
    %274 = vmatmul.mubr.f32.gmra.mrb[0].mxu0 %v82
    %v275 = vpop.f32.mrb[0].mxu0
    %v276 = vadd.f32 0.0, %v275
    %v277 = vpop.f32.mrb[0].mxu0
    %278 = vmatprep.mubr.f32.mxu0 0.0
    %279 = vmatmul.mubr.f32.gmra.mrb[0].mxu0 %v85
    %v280 = vpop.f32.mrb[0].mxu0
    %v281 = vadd.f32 0.0, %v280
    %v282 = vpop.f32.mrb[0].mxu0
    %283 = vmatprep.mubr.f32.mxu0 0.0
    %284 = vmatmul.mubr.f32.gmra.mrb[0].mxu0 %v88
    %v285 = vpop.f32.mrb[0].mxu0
    %v286 = vadd.f32 0.0, %v285
    %v287 = vpop.f32.mrb[0].mxu0
    %288 = vmatprep.mubr.f32.mxu0 0.0
    %289 = vmatmul.mubr.f32.gmra.mrb[0].mxu0 %v91
    %v290 = vpop.f32.mrb[0].mxu0
    %v291 = vadd.f32 0.0, %v290
    %v292 = vpop.f32.mrb[0].mxu0
    %293 = vmatprep.mubr.f32.mxu0 0.0
    %294 = vmatmul.mubr.f32.gmra.mrb[0].mxu0 %v94
    %v295 = vpop.f32.mrb[0].mxu0
    %v296 = vadd.f32 0.0, %v295
    %v297 = vpop.f32.mrb[0].mxu0
    %298 = vmatprep.mubr.f32.mxu0 0.0
    %299 = vmatmul.mubr.f32.gmra.mrb[0].mxu0 %v97
    %v300 = vpop.f32.mrb[0].mxu0
    %v301 = vadd.f32 0.0, %v300
    %v302 = vpop.f32.mrb[0].mxu0
    %303 = vmatprep.mubr.f32.mxu0 0.0
    %304 = vmatmul.mubr.f32.gmra.mrb[0].mxu0 %v100
    %v305 = vpop.f32.mrb[0].mxu0
    %v306 = vadd.f32 0.0, %v305
    %v307 = vpop.f32.mrb[0].mxu0
    %308 = vmatprep.mubr.f32.mxu0 0.0
    %309 = vmatmul.mubr.f32.gmra.mrb[0].mxu0 %v103
    %v310 = vpop.f32.mrb[0].mxu0
    %v311 = vadd.f32 0.0, %v310
    %v312 = vpop.f32.mrb[0].mxu0
    %313 = vmatprep.mubr.f32.mxu0 0.0
    %314 = vmatmul.mubr.f32.gmra.mrb[0].mxu0 %v106
    %v315 = vpop.f32.mrb[0].mxu0
    %v316 = vadd.f32 0.0, %v315
    %v317 = vpop.f32.mrb[0].mxu0
    %318 = vmatprep.mubr.f32.mxu0 0.0
    %319 = vmatmul.mubr.f32.gmra.mrb[0].mxu0 %v109
    %v320 = vpop.f32.mrb[0].mxu0
    %v321 = vadd.f32 0.0, %v320
    %v322 = vpop.f32.mrb[0].mxu0
    %323 = vmatprep.mubr.f32.mxu0 0.0
    %324 = vmatmul.mubr.f32.gmra.mrb[0].mxu0 %v112
    %v325 = vpop.f32.mrb[0].mxu0
    %v326 = vadd.f32 0.0, %v325
    %v327 = vpop.f32.mrb[0].mxu0
    %328 = vmatprep.mubr.f32.mxu0 0.0
    %329 = vmatmul.mubr.f32.gmra.mrb[0].mxu0 %v115
    %v330 = vpop.f32.mrb[0].mxu0
    %v331 = vadd.f32 0.0, %v330
    %v332 = vpop.f32.mrb[0].mxu0
    %333 = vmatprep.mubr.f32.mxu0 0.0
    %334 = vmatmul.mubr.f32.gmra.mrb[0].mxu0 %v118
    %v335 = vpop.f32.mrb[0].mxu0
    %v336 = vadd.f32 0.0, %v335
    %v337 = vpop.f32.mrb[0].mxu0
    %338 = vmatprep.mubr.f32.mxu0 0.0
    %339 = vmatmul.mubr.f32.gmra.mrb[0].mxu0 %v121
    %v340 = vpop.f32.mrb[0].mxu0
    %v341 = vadd.f32 0.0, %v340
    %v342 = vpop.f32.mrb[0].mxu0
    %343 = vmatprep.mubr.f32.mxu0 0.0
    %344 = vmatmul.mubr.f32.gmra.mrb[0].mxu0 %v124
    %v345 = vpop.f32.mrb[0].mxu0
    %v346 = vadd.f32 0.0, %v345
    %v347 = vpop.f32.mrb[0].mxu0
    %348 = vmatprep.mubr.f32.mxu0 0.0
    %349 = vmatmul.mubr.f32.gmra.mrb[0].mxu0 %v127
    %v350 = vpop.f32.mrb[0].mxu0
    %v351 = vadd.f32 0.0, %v350
    %v352 = vpop.f32.mrb[0].mxu0
    %353 = vmatprep.mubr.f32.mxu0 0.0
    %354 = vmatmul.mubr.f32.gmra.mrb[0].mxu0 %v130
    %v355 = vpop.f32.mrb[0].mxu0
    %v356 = vadd.f32 0.0, %v355
    %v357 = vpop.f32.mrb[0].mxu0
    %358 = vmatprep.mubr.f32.mxu0 0.0
    %359 = vmatmul.mubr.f32.gmra.mrb[0].mxu0 %v133
    %v360 = vpop.f32.mrb[0].mxu0
    %v361 = vadd.f32 0.0, %v360
    %v362 = vpop.f32.mrb[0].mxu0
    %363 = vmatprep.mubr.f32.mxu0 0.0
    %364 = vmatmul.mubr.f32.gmra.mrb[0].mxu0 %v136
    %v365 = vpop.f32.mrb[0].mxu0
    %v366 = vadd.f32 0.0, %v365
    %v367 = vpop.f32.mrb[0].mxu0
    %368 = vmatprep.mubr.f32.mxu0 0.0
    %369 = vmatmul.mubr.f32.gmra.mrb[0].mxu0 %v139
    %v370 = vpop.f32.mrb[0].mxu0
    %v371 = vadd.f32 0.0, %v370
    %v372 = vpop.f32.mrb[0].mxu0
    %373 = vmatprep.mubr.f32.mxu0 0.0
    %374 = vmatmul.mubr.f32.gmra.mrb[0].mxu0 %v142
    %v375 = vpop.f32.mrb[0].mxu0
    %v376 = vadd.f32 0.0, %v375
    %v377 = vpop.f32.mrb[0].mxu0
    %378 = vmatprep.mubr.f32.mxu0 0.0
    %379 = vmatmul.mubr.f32.gmra.mrb[0].mxu0 %v145
    %v380 = vpop.f32.mrb[0].mxu0
    %v381 = vadd.f32 0.0, %v380
    %v382 = vpop.f32.mrb[0].mxu0
    %383 = vdwg.mxu0
    %384 = vst.msk [vmem:[%s2] sm:$0xff] %vm50, %v226
    %385 = vst.msk [vmem:[%s2 + $0x8] sm:$0xff] %vm50, %v231
    %386 = vst.msk [vmem:[%s2 + $0x10] sm:$0xff] %vm50, %v236
    %387 = vst.msk [vmem:[%s2 + $0x18] sm:$0xff] %vm50, %v241
    %388 = vst.msk [vmem:[%s2 + $0x20] sm:$0xff] %vm50, %v246
    %389 = vst.msk [vmem:[%s2 + $0x28] sm:$0xff] %vm50, %v251
    %390 = vst.msk [vmem:[%s2 + $0x30] sm:$0xff] %vm50, %v256
    %391 = vst.msk [vmem:[%s2 + $0x38] sm:$0xff] %vm50, %v261
    %392 = vst.msk [vmem:[%s2 + $0x40] sm:$0xff] %vm50, %v266
    %393 = vst.msk [vmem:[%s2 + $0x48] sm:$0xff] %vm50, %v271
    %394 = vst.msk [vmem:[%s2 + $0x50] sm:$0xff] %vm50, %v276
    %395 = vst.msk [vmem:[%s2 + $0x58] sm:$0xff] %vm50, %v281
    %396 = vst.msk [vmem:[%s2 + $0x60] sm:$0xff] %vm50, %v286
    %397 = vst.msk [vmem:[%s2 + $0x68] sm:$0xff] %vm50, %v291
    %398 = vst.msk [vmem:[%s2 + $0x70] sm:$0xff] %vm50, %v296
    %399 = vst.msk [vmem:[%s2 + $0x78] sm:$0xff] %vm50, %v301
    %400 = vst.msk [vmem:[%s2 + $0x80] sm:$0xff] %vm50, %v306
    %401 = vst.msk [vmem:[%s2 + $0x88] sm:$0xff] %vm50, %v311
    %402 = vst.msk [vmem:[%s2 + $0x90] sm:$0xff] %vm50, %v316
    %403 = vst.msk [vmem:[%s2 + $0x98] sm:$0xff] %vm50, %v321
    %404 = vst.msk [vmem:[%s2 + $0xa0] sm:$0xff] %vm50, %v326
    %405 = vst.msk [vmem:[%s2 + $0xa8] sm:$0xff] %vm50, %v331
    %406 = vst.msk [vmem:[%s2 + $0xb0] sm:$0xff] %vm50, %v336
    %407 = vst.msk [vmem:[%s2 + $0xb8] sm:$0xff] %vm50, %v341
    %408 = vst.msk [vmem:[%s2 + $0xc0] sm:$0xff] %vm50, %v346
    %409 = vst.msk [vmem:[%s2 + $0xc8] sm:$0xff] %vm50, %v351
    %410 = vst.msk [vmem:[%s2 + $0xd0] sm:$0xff] %vm50, %v356
    %411 = vst.msk [vmem:[%s2 + $0xd8] sm:$0xff] %vm50, %v361
    %412 = vst.msk [vmem:[%s2 + $0xe0] sm:$0xff] %vm50, %v366
    %413 = vst.msk [vmem:[%s2 + $0xe8] sm:$0xff] %vm50, %v371
    %414 = vst.msk [vmem:[%s2 + $0xf0] sm:$0xff] %vm50, %v376
    %415 = vst.msk [vmem:[%s2 + $0xf8] sm:$0xff] %vm50, %v381
    %v416 = vmul.f32 %v226, %v226
    %v417 = vmul.f32 %v231, %v231
    %v418 = vmul.f32 %v236, %v236
    %v419 = vmul.f32 %v241, %v241
    %v420 = vmul.f32 %v246, %v246
    %v421 = vmul.f32 %v251, %v251
    %v422 = vmul.f32 %v256, %v256
    %v423 = vmul.f32 %v261, %v261
    %v424 = vmul.f32 %v266, %v266
    %v425 = vmul.f32 %v271, %v271
    %v426 = vmul.f32 %v276, %v276
    %v427 = vmul.f32 %v281, %v281
    %v428 = vmul.f32 %v286, %v286
    %v429 = vmul.f32 %v291, %v291
    %v430 = vmul.f32 %v296, %v296
    %v431 = vmul.f32 %v301, %v301
    %v432 = vmul.f32 %v306, %v306
    %v433 = vmul.f32 %v311, %v311
    %v434 = vmul.f32 %v316, %v316
    %v435 = vmul.f32 %v321, %v321
    %v436 = vmul.f32 %v326, %v326
    %v437 = vmul.f32 %v331, %v331
    %v438 = vmul.f32 %v336, %v336
    %v439 = vmul.f32 %v341, %v341
    %v440 = vmul.f32 %v346, %v346
    %v441 = vmul.f32 %v351, %v351
    %v442 = vmul.f32 %v356, %v356
    %v443 = vmul.f32 %v361, %v361
    %v444 = vmul.f32 %v366, %v366
    %v445 = vmul.f32 %v371, %v371
    %v446 = vmul.f32 %v376, %v376
    %v447 = vmul.f32 %v381, %v381
    %v449 = vsel %vm50, 1.0, 0
    %v452 = vsel %vm50, %v416, 0
    %v455 = vsel %vm50, %v417, 0
    %v458 = vsel %vm50, %v418, 0
    %v461 = vsel %vm50, %v419, 0
    %v464 = vsel %vm50, %v420, 0
    %v467 = vsel %vm50, %v421, 0
    %v470 = vsel %vm50, %v422, 0
    %v473 = vsel %vm50, %v423, 0
    %v476 = vsel %vm50, %v424, 0
    %v479 = vsel %vm50, %v425, 0
    %v482 = vsel %vm50, %v426, 0
    %v485 = vsel %vm50, %v427, 0
    %v488 = vsel %vm50, %v428, 0
    %v491 = vsel %vm50, %v429, 0
    %v494 = vsel %vm50, %v430, 0
    %v497 = vsel %vm50, %v431, 0
    %v500 = vsel %vm50, %v432, 0
    %v503 = vsel %vm50, %v433, 0
    %v506 = vsel %vm50, %v434, 0
    %v509 = vsel %vm50, %v435, 0
    %v512 = vsel %vm50, %v436, 0
    %v515 = vsel %vm50, %v437, 0
    %v518 = vsel %vm50, %v438, 0
    %v521 = vsel %vm50, %v439, 0
    %v524 = vsel %vm50, %v440, 0
    %v527 = vsel %vm50, %v441, 0
    %v530 = vsel %vm50, %v442, 0
    %v533 = vsel %vm50, %v443, 0
    %v536 = vsel %vm50, %v444, 0
    %v539 = vsel %vm50, %v445, 0
    %v542 = vsel %vm50, %v446, 0
    %v545 = vsel %vm50, %v447, 0
    %547 = vmatprep.subr.mxu0 0.0
    %548 = vmatpush1.xpose.msra.mxu0 %v452
    %549 = vmatprep.subr.mxu0 0.0
    %550 = vmatpush1.xpose.msra.mxu0 %v455
    %551 = vmatprep.subr.mxu0 0.0
    %552 = vmatpush1.xpose.msra.mxu0 %v458
    %553 = vmatprep.subr.mxu0 0.0
    %554 = vmatpush1.xpose.msra.mxu0 %v461
    %555 = vmatprep.subr.mxu0 0.0
    %556 = vmatpush1.xpose.msra.mxu0 %v464
    %557 = vmatprep.subr.mxu0 0.0
    %558 = vmatpush1.xpose.msra.mxu0 %v467
    %559 = vmatprep.subr.mxu0 0.0
    %560 = vmatpush1.xpose.msra.mxu0 %v470
    %561 = vmatprep.subr.mxu0 0.0
    %562 = vmatpush1.xpose.msra.mxu0 %v473
    %563 = vmatprep.subr.mxu0 0.0
    %564 = vmatpush1.xpose.msra.mxu0 %v476
    %565 = vmatprep.subr.mxu0 0.0
    %566 = vmatpush1.xpose.msra.mxu0 %v479
    %567 = vmatprep.subr.mxu0 0.0
    %568 = vmatpush1.xpose.msra.mxu0 %v482
    %569 = vmatprep.subr.mxu0 0.0
    %570 = vmatpush1.xpose.msra.mxu0 %v485
    %571 = vmatprep.subr.mxu0 0.0
    %572 = vmatpush1.xpose.msra.mxu0 %v488
    %573 = vmatprep.subr.mxu0 0.0
    %574 = vmatpush1.xpose.msra.mxu0 %v491
    %575 = vmatprep.subr.mxu0 0.0
    %576 = vmatpush1.xpose.msra.mxu0 %v494
    %577 = vmatprep.subr.mxu0 0.0
    %578 = vmatpush1.xpose.msra.mxu0 %v497
    %579 = vmatprep.subr.mxu0 0.0
    %580 = vmatpush1.xpose.msra.mxu0 %v500
    %581 = vmatprep.subr.mxu0 0.0
    %582 = vmatpush1.xpose.msra.mxu0 %v503
    %583 = vmatprep.subr.mxu0 0.0
    %584 = vmatpush1.xpose.msra.mxu0 %v506
    %585 = vmatprep.subr.mxu0 0.0
    %586 = vmatpush1.xpose.msra.mxu0 %v509
    %587 = vmatprep.subr.mxu0 0.0
    %588 = vmatpush1.xpose.msra.mxu0 %v512
    %589 = vmatprep.subr.mxu0 0.0
    %590 = vmatpush1.xpose.msra.mxu0 %v515
    %591 = vmatprep.subr.mxu0 0.0
    %592 = vmatpush1.xpose.msra.mxu0 %v518
    %593 = vmatprep.subr.mxu0 0.0
    %594 = vmatpush1.xpose.msra.mxu0 %v521
    %595 = vmatprep.subr.mxu0 0.0
    %596 = vmatpush1.xpose.msra.mxu0 %v524
    %597 = vmatprep.subr.mxu0 0.0
    %598 = vmatpush1.xpose.msra.mxu0 %v527
    %599 = vmatprep.subr.mxu0 0.0
    %600 = vmatpush1.xpose.msra.mxu0 %v530
    %601 = vmatprep.subr.mxu0 0.0
    %602 = vmatpush1.xpose.msra.mxu0 %v533
    %603 = vmatprep.subr.mxu0 0.0
    %604 = vmatpush1.xpose.msra.mxu0 %v536
    %605 = vmatprep.subr.mxu0 0.0
    %606 = vmatpush1.xpose.msra.mxu0 %v539
    %607 = vmatprep.subr.mxu0 0.0
    %608 = vmatpush1.xpose.msra.mxu0 %v542
    %609 = vmatprep.subr.mxu0 0.0
    %610 = vmatpush1.xpose.msra.mxu0 %v545
    %611 = vmatprep.mubr.f32.mxu0 0.0
    %612 = vmatmul.mubr.f32.gmra.mrb[0].mxu0 %v449
    %v613 = vpop.f32.mrb[0].mxu0
    %v614 = vadd.f32 0.0, %v613
    %v615 = vpop.f32.mrb[0].mxu0
    %v616 = vadd.f32 0.0, %v615
    %617 = vdwg.mxu0
    %v618 = vmul.f32 %v614, 0.5
    %v619 = vmul.f32 %v616, 0.5
    %v622 = vcombine.low %v618, %v619
    %v624 = vunpack.c.l.s4 1966171168
    %v625 = vunpack.c.0.s8 %v624
    %v626 = vlaneseq
    %v627 = vshrl.u32 %v626, 7
    %v628 = vsub.s32 %v625, %v627
    %v629 = vrot.slane %v622, %v628
    %v631 = vunpack.c.l.s4 1966171168
    %v632 = vunpack.c.0.s8 %v631
    %v633 = vlaneseq
    %v634 = vshrl.u32 %v633, 7
    %v635 = vsub.s32 %v632, %v634
    %v636 = vrot.slane %v629, %v635
    %v638 = vlaneseq
    %vm639 = vcmp.ge.s32.totalorder %v638, 0
    %vm640 = vcmp.lt.s32.totalorder %v638, 256
    %vm641 = vmand %vm639, %vm640
    %642 = vst.msk [vmem:[#allocation2] sm:$0x3] %vm641, %v636
    // Predicated region
    $region10: #{tpu_custom_call.1} parent=1 // pred_check
      _
    $region11: #{tpu_custom_call.1} parent=1 // pred_check_branch
      %644 = sbr.rel (0) target = $region13
    $region12: #{tpu_custom_call.1} parent=1 // pred_region
      _
    $region13: #{tpu_custom_call.1} parent=1 // pred_fallthru
      _
    // Predicated region
    $region14: #{tpu_custom_call.1} parent=1 // pred_check
      _
    $region15: #{tpu_custom_call.1} parent=1 // pred_check_branch
      %646 = sbr.rel (0) target = $region17
    $region16: #{tpu_custom_call.1} parent=1 // pred_region
      %s648 = ssub.s32 32, 32
      %649 = vsyncadd [#allocation3], %s648
      %s651 = sshll.u32 [#allocation2], 4
      %s652 = int_to_ptr.vmem [resolvable:$true] %s651
      %654 = dma.vmem_to_hbm [thread:$0]  %s652, 32, %s3, [#allocation3]
    $region17: #{tpu_custom_call.1} parent=1 // pred_fallthru
      _
    // Predicated region
    $region18: #{tpu_custom_call.1} parent=1 // pred_check
      _
    $region19: #{tpu_custom_call.1} parent=1 // pred_check_branch
      %656 = sbr.rel (0) target = $region21
    $region20: #{tpu_custom_call.1} parent=1 // pred_region
      _
    $region21: #{tpu_custom_call.1} parent=1 // pred_fallthru
      _
    // Predicated region
    $region22: #{tpu_custom_call.1} parent=1 // pred_check
      _
    $region23: #{tpu_custom_call.1} parent=1 // pred_check_branch
      %658 = sbr.rel (0) target = $region25
    $region24: #{tpu_custom_call.1} parent=1 // pred_region
      %659 = dma.done [#allocation3], 32
    $region25: #{tpu_custom_call.1} parent=1 // pred_fallthru
      _
    %660 = vsyncpa [#allocation3], 1

</llo_original>
